<compile_context>
chip_gen: v7x
topology: tpu7x:2x2x1
jax: 0.10.0
libtpu: 0.0.40
codegen_flags: <defaults>
</compile_context>

<pallas_src>
import jax
import jax.numpy as jnp
from jax.experimental import pallas as pl
from jax.experimental.pallas import tpu as pltpu


def ffn_kernel(x_ref, w1_ref, b1_ref, w2_ref, lnp_ref, o_ref):
    # x_ref: (TM, d_in) tile of tokens; weights/params are full (constant index).
    x = x_ref[...]  # native dtype -> MXU directly (bf16 gets native throughput)

    # First linear + ReLU (MXU matmul, f32 accumulate).
    h = jnp.dot(x, w1_ref[...], preferred_element_type=jnp.float32)
    h = jnp.maximum(h + b1_ref[...].astype(jnp.float32), 0.0)

    # Second linear.  Cast the ReLU output to the weight dtype so a bf16 W2
    # runs a native bf16 MXU pass (no-op for f32 weights).
    y = jnp.dot(h.astype(w2_ref.dtype), w2_ref[...],
                preferred_element_type=jnp.float32)

    # lnp_ref packs (b2, gamma, beta) as a (3, d_in) block.
    lnp = lnp_ref[...].astype(jnp.float32)
    b2 = lnp[0:1, :]
    gamma = lnp[1:2, :]
    beta = lnp[2:3, :]

    # TODO(synk): dropout is a no-op in eval mode; train-mode dropout would
    # need pltpu.prng_seed + pltpu.prng_random_bits masking here.

    # Residual add + LayerNorm over the feature (last) axis, eps = 1e-6.
    # Keep this epilogue in f32 (v5e VPU has no bf16 path; also for accuracy).
    y = y + b2 + x.astype(jnp.float32)
    mean = jnp.mean(y, axis=-1, keepdims=True)
    cen = y - mean
    var = jnp.mean(cen * cen, axis=-1, keepdims=True)
    y = cen * jax.lax.rsqrt(var + 1e-6)
    y = y * gamma + beta

    o_ref[...] = y.astype(o_ref.dtype)


def _round_up(v, m):
    return ((v + m - 1) // m) * m


def positionwise_feed_forward(x, w1, b1, w2, b2, gamma, beta, *, tm=256):
    """x: [batch, seq, d_in] -> [batch, seq, d_in]."""
    B, S, d_in = x.shape
    d_hid = w1.shape[1]
    N = B * S

    x_bytes = jnp.dtype(x.dtype).itemsize
    w_bytes = jnp.dtype(w1.dtype).itemsize

    # ---- tile selection against an explicit VMEM budget (v7x: 64 MiB phys) ----
    tm = min(tm, _round_up(N, 8))          # never larger than (padded) row count
    tm = max(tm, 8)

    def vmem_budget(rows):
        stream = 2 * 2 * rows * d_in * x_bytes          # x + out, double-buffered
        weights = 2 * 2 * d_in * d_hid * w_bytes        # W1 + W2, double-buffered
        params = 2 * 8 * (d_hid + 3 * d_in) * w_bytes   # b1 + (b2,gamma,beta), padded
        interm = rows * d_hid * 4 + 2 * rows * d_in * 4  # f32 h + LN temps
        return stream + weights + params + interm

    while tm > 128 and vmem_budget(tm) > 48 * 1024 * 1024:
        tm //= 2
    # Keep >= 2 grid steps when there is enough work (v7x has 2 TensorCores).
    while tm > 128 and (N + tm - 1) // tm < 2:
        tm //= 2

    vmem_limit = int(min(64 * 1024 * 1024,
                         max(32 * 1024 * 1024, vmem_budget(tm) * 3 // 2)))

    # ---- pad rows up to a multiple of tm (zero rows are sliced off after) ----
    N_pad = _round_up(N, tm)
    x2 = x.reshape(N, d_in)
    if N_pad != N:
        x2 = jnp.pad(x2, ((0, N_pad - N), (0, 0)))

    b1_2 = b1.reshape(1, d_hid)
    # Fuse the three (d_in,) parameter vectors into one (3, d_in) block.
    ln_params = jnp.stack(
        [b2.astype(x.dtype), gamma.astype(x.dtype), beta.astype(x.dtype)], axis=0)

    # Advisory cost estimate for XLA's scheduler.
    cost = pl.CostEstimate(
        flops=4 * N_pad * d_in * d_hid,                       # two matmuls
        transcendentals=N_pad,                                # one rsqrt per row
        bytes_accessed=(2 * N_pad * d_in * x_bytes            # x in + out
                        + 2 * d_in * d_hid * w_bytes          # W1 + W2
                        + (d_hid + 3 * d_in) * w_bytes))

    # NOTE: d_in < 128 (like the toy test shape) produces masked partial
    # stores; at production d_in (e.g. 512) the output is lane-dense.
    grid = (N_pad // tm,)

    out = pl.pallas_call(
        ffn_kernel,
        out_shape=jax.ShapeDtypeStruct((N_pad, d_in), x.dtype),
        grid_spec=pltpu.PrefetchScalarGridSpec(
            num_scalar_prefetch=0,
            grid=grid,
            in_specs=[
                pl.BlockSpec((tm, d_in), lambda i: (i, 0)),      # x tile (streamed)
                pl.BlockSpec((d_in, d_hid), lambda i: (0, 0)),   # W1 (resident)
                pl.BlockSpec((1, d_hid), lambda i: (0, 0)),      # b1
                pl.BlockSpec((d_hid, d_in), lambda i: (0, 0)),   # W2 (resident)
                pl.BlockSpec((3, d_in), lambda i: (0, 0)),       # b2 / gamma / beta
            ],
            out_specs=pl.BlockSpec((tm, d_in), lambda i: (i, 0)),
        ),
        compiler_params=pltpu.CompilerParams(
            dimension_semantics=("parallel",),
            vmem_limit_bytes=vmem_limit,
        ),
        cost_estimate=cost,
    )(x2, w1, b1_2, w2, ln_params)

    return out[:N].reshape(B, S, d_in)


def _reference(x, w1, b1, w2, b2, gamma, beta):
    h = jnp.maximum(x @ w1 + b1, 0.0)
    y = h @ w2 + b2 + x
    mean = jnp.mean(y, axis=-1, keepdims=True)
    var = jnp.mean((y - mean) ** 2, axis=-1, keepdims=True)
    return (y - mean) * jax.lax.rsqrt(var + 1e-6) * gamma + beta


if __name__ == "__main__":
    key = jax.random.PRNGKey(0)
    batch, seq, d_in, d_hid = 2, 8, 32, 64

    k_x, k_w1, k_b1, k_w2, k_b2 = jax.random.split(key, 5)
    x = jax.random.normal(k_x, (batch, seq, d_in), dtype=jnp.float32)

    # Deterministic parameter init (synthetic; matches nn.Linear/LayerNorm shapes).
    # PyTorch w_1.weight is (d_hid, d_in); we store its transpose for x @ W1.
    w1 = jax.random.normal(k_w1, (d_in, d_hid), dtype=jnp.float32) * (1.0 / d_in**0.5)
    b1 = jax.random.normal(k_b1, (d_hid,), dtype=jnp.float32) * 0.01
    w2 = jax.random.normal(k_w2, (d_hid, d_in), dtype=jnp.float32) * (1.0 / d_hid**0.5)
    b2 = jax.random.normal(k_b2, (d_in,), dtype=jnp.float32) * 0.01
    gamma = jnp.ones((d_in,), dtype=jnp.float32)
    beta = jnp.zeros((d_in,), dtype=jnp.float32)

    out = positionwise_feed_forward(x, w1, b1, w2, b2, gamma, beta)
    out = jax.block_until_ready(out)

    ref = _reference(x, w1, b1, w2, b2, gamma, beta)
    assert out.shape == x.shape
    assert jnp.allclose(out, ref, atol=1e-4, rtol=1e-4), "mismatch vs reference"

    print("KERNEL_OK")
</pallas_src>

<mosaic_0001>
module attributes {stable_mosaic.version = 11 : i64} {
  func.func @ffn_kernel(%arg0: i32, %arg1: memref<16x32xf32, #tpu.memory_space<vmem>>, %arg2: memref<32x64xf32, #tpu.memory_space<vmem>>, %arg3: memref<1x64xf32, #tpu.memory_space<vmem>>, %arg4: memref<64x32xf32, #tpu.memory_space<vmem>>, %arg5: memref<3x32xf32, #tpu.memory_space<vmem>>, %arg6: memref<16x32xf32, #tpu.memory_space<vmem>>) attributes {dimension_semantics = [#tpu.dimension_semantics<parallel>], iteration_bounds = array<i64: 1>, scalar_prefetch = 0 : i64, scratch_operands = 0 : i64, tpu.core_type = #tpu.core_type<tc>, window_params = [{transform_indices = @transform_0, window_bounds = array<i64: 16, 32>}, {pipeline_mode = #tpu.pipeline_mode<synchronous>, transform_indices = @transform_1, window_bounds = array<i64: 32, 64>}, {pipeline_mode = #tpu.pipeline_mode<synchronous>, transform_indices = @transform_2, window_bounds = array<i64: 1, 64>}, {pipeline_mode = #tpu.pipeline_mode<synchronous>, transform_indices = @transform_3, window_bounds = array<i64: 64, 32>}, {pipeline_mode = #tpu.pipeline_mode<synchronous>, transform_indices = @transform_4, window_bounds = array<i64: 3, 32>}, {transform_indices = @transform_5, window_bounds = array<i64: 16, 32>}]} {
    %c0 = arith.constant 0 : index
    %c0_0 = arith.constant 0 : index
    %0 = vector.load %arg1[%c0, %c0_0] : memref<16x32xf32, #tpu.memory_space<vmem>>, vector<16x32xf32>
    %c0_1 = arith.constant 0 : index
    %c0_2 = arith.constant 0 : index
    %1 = vector.load %arg2[%c0_1, %c0_2] : memref<32x64xf32, #tpu.memory_space<vmem>>, vector<32x64xf32>
    %cst = arith.constant dense<0.000000e+00> : vector<16x64xf32>
    %2 = tpu.matmul %0, %1, %cst {dimension_numbers = #tpu.dot_dimension_numbers<[1], [0], [0], [1], [0, 0, 1, 1], [], []>} : vector<16x32xf32>, vector<32x64xf32>, vector<16x64xf32> -> vector<16x64xf32>
    %c0_3 = arith.constant 0 : index
    %c0_4 = arith.constant 0 : index
    %3 = vector.load %arg3[%c0_3, %c0_4] : memref<1x64xf32, #tpu.memory_space<vmem>>, vector<1x64xf32>
    %4 = vector.broadcast %3 : vector<1x64xf32> to vector<16x64xf32>
    %5 = arith.addf %2, %4 : vector<16x64xf32>
    %cst_5 = arith.constant 0.000000e+00 : f32
    %6 = vector.broadcast %cst_5 : f32 to vector<16x64xf32>
    %7 = arith.maximumf %5, %6 : vector<16x64xf32>
    %c0_6 = arith.constant 0 : index
    %c0_7 = arith.constant 0 : index
    %8 = vector.load %arg4[%c0_6, %c0_7] : memref<64x32xf32, #tpu.memory_space<vmem>>, vector<64x32xf32>
    %cst_8 = arith.constant dense<0.000000e+00> : vector<16x32xf32>
    %9 = tpu.matmul %7, %8, %cst_8 {dimension_numbers = #tpu.dot_dimension_numbers<[1], [0], [0], [1], [0, 0, 1, 1], [], []>} : vector<16x64xf32>, vector<64x32xf32>, vector<16x32xf32> -> vector<16x32xf32>
    %c0_9 = arith.constant 0 : index
    %c0_10 = arith.constant 0 : index
    %10 = vector.load %arg5[%c0_9, %c0_10] : memref<3x32xf32, #tpu.memory_space<vmem>>, vector<3x32xf32>
    %11 = vector.extract_strided_slice %10 {offsets = [0, 0], sizes = [1, 32], strides = [1, 1]} : vector<3x32xf32> to vector<1x32xf32>
    %12 = vector.extract_strided_slice %10 {offsets = [1, 0], sizes = [1, 32], strides = [1, 1]} : vector<3x32xf32> to vector<1x32xf32>
    %13 = vector.extract_strided_slice %10 {offsets = [2, 0], sizes = [1, 32], strides = [1, 1]} : vector<3x32xf32> to vector<1x32xf32>
    %14 = vector.broadcast %11 : vector<1x32xf32> to vector<16x32xf32>
    %15 = arith.addf %9, %14 : vector<16x32xf32>
    %16 = arith.addf %15, %0 : vector<16x32xf32>
    %cst_11 = arith.constant dense<0.000000e+00> : vector<16xf32>
    %17 = vector.multi_reduction <add>, %16, %cst_11 [1] : vector<16x32xf32> to vector<16xf32>
    %18 = vector.shape_cast %17 : vector<16xf32> to vector<16x1xf32>
    %cst_12 = arith.constant 3.200000e+01 : f32
    %19 = vector.broadcast %cst_12 : f32 to vector<16x1xf32>
    %20 = arith.divf %18, %19 : vector<16x1xf32>
    %21 = vector.broadcast %20 : vector<16x1xf32> to vector<16x32xf32>
    %22 = arith.subf %16, %21 : vector<16x32xf32>
    %23 = arith.mulf %22, %22 : vector<16x32xf32>
    %cst_13 = arith.constant dense<0.000000e+00> : vector<16xf32>
    %24 = vector.multi_reduction <add>, %23, %cst_13 [1] : vector<16x32xf32> to vector<16xf32>
    %25 = vector.shape_cast %24 : vector<16xf32> to vector<16x1xf32>
    %cst_14 = arith.constant 3.200000e+01 : f32
    %26 = vector.broadcast %cst_14 : f32 to vector<16x1xf32>
    %27 = arith.divf %25, %26 : vector<16x1xf32>
    %cst_15 = arith.constant 9.99999997E-7 : f32
    %28 = vector.broadcast %cst_15 : f32 to vector<16x1xf32>
    %29 = arith.addf %27, %28 : vector<16x1xf32>
    %30 = math.rsqrt %29 : vector<16x1xf32>
    %31 = vector.broadcast %30 : vector<16x1xf32> to vector<16x32xf32>
    %32 = arith.mulf %22, %31 : vector<16x32xf32>
    %33 = vector.broadcast %12 : vector<1x32xf32> to vector<16x32xf32>
    %34 = arith.mulf %32, %33 : vector<16x32xf32>
    %35 = vector.broadcast %13 : vector<1x32xf32> to vector<16x32xf32>
    %36 = arith.addf %34, %35 : vector<16x32xf32>
    %c0_16 = arith.constant 0 : index
    %c0_17 = arith.constant 0 : index
    %37 = vector.load %arg6[%c0_16, %c0_17] : memref<16x32xf32, #tpu.memory_space<vmem>>, vector<16x32xf32>
    tpu.vector_store %arg6[%c0_16, %c0_17], %36 {strides = array<i32>} : memref<16x32xf32, #tpu.memory_space<vmem>>, vector<16x32xf32>,
    return
  }
  func.func @transform_0(%arg0: i32) -> (i32, i32) {
    %c0_i32 = arith.constant 0 : i32
    %c0_i32_0 = arith.constant 0 : i32
    return %arg0, %c0_i32 : i32, i32
  }
  func.func @transform_1(%arg0: i32) -> (i32, i32) {
    %c0_i32 = arith.constant 0 : i32
    %c0_i32_0 = arith.constant 0 : i32
    %c0_i32_1 = arith.constant 0 : i32
    return %c0_i32, %c0_i32_0 : i32, i32
  }
  func.func @transform_2(%arg0: i32) -> (i32, i32) {
    %c0_i32 = arith.constant 0 : i32
    %c0_i32_0 = arith.constant 0 : i32
    %c0_i32_1 = arith.constant 0 : i32
    return %c0_i32, %c0_i32_0 : i32, i32
  }
  func.func @transform_3(%arg0: i32) -> (i32, i32) {
    %c0_i32 = arith.constant 0 : i32
    %c0_i32_0 = arith.constant 0 : i32
    %c0_i32_1 = arith.constant 0 : i32
    return %c0_i32, %c0_i32_0 : i32, i32
  }
  func.func @transform_4(%arg0: i32) -> (i32, i32) {
    %c0_i32 = arith.constant 0 : i32
    %c0_i32_0 = arith.constant 0 : i32
    %c0_i32_1 = arith.constant 0 : i32
    return %c0_i32, %c0_i32_0 : i32, i32
  }
  func.func @transform_5(%arg0: i32) -> (i32, i32) {
    %c0_i32 = arith.constant 0 : i32
    %c0_i32_0 = arith.constant 0 : i32
    return %arg0, %c0_i32 : i32, i32
  }
}

</mosaic_0001>

<llo_original>
// kernel: tpu_custom_call.1
$region0: #{tpu_custom_call.1}
  #allocation0 [shape = 'u32[]', space=smem, size = 0x4, offset = 0x4, fixed_abs, tag = 'smem constant byte address 0x4 - core index']
  #allocation1 [shape = 'u32[144,128]{1,0:T(1,128)}', space=vmem, size = 0x12000, scoped, tag = 'internal scratch']
  %s0 = inlined_call_operand.vmem [shape: f32[16,32], index: 0, kind: input, shape index: {}]
  %s1 = inlined_call_operand.vmem [shape: f32[32,64], index: 1, kind: input, shape index: {}]
  %s2 = inlined_call_operand.vmem [shape: f32[1,64], index: 2, kind: input, shape index: {}]
  %s3 = inlined_call_operand.vmem [shape: f32[64,32], index: 3, kind: input, shape index: {}]
  %s4 = inlined_call_operand.vmem [shape: f32[3,32], index: 4, kind: input, shape index: {}]
  %s5 = inlined_call_operand.hbm [shape: f32[16,32], index: 5, kind: output, shape index: {}]
  %s6 = sld [smem:[#allocation0]]
  $region30: #{tpu_custom_call.1} parent=0
    _
  %s8 = ssub.s32 1, %s6
  %s9 = scalar_select 0, %s8, %s6
  $region1: #{tpu_custom_call.1} parent=0
    #allocation2 [shape = 'u8[8192]{0}', space=vmem, size = 0x2000, scoped, tag = 'output window, operand 0, single buffered']
    #allocation3 [shape = 's32[1]{0}', space=sflag, size = 0x4, scoped, tag = 'scoped memory for tpu_custom_call.1']
    %10 = vsyncpa [#allocation3], 0
    // Predicated region
    $region2: #{tpu_custom_call.1} parent=1 // pred_check
      _
    $region3: #{tpu_custom_call.1} parent=1 // pred_check_branch
      %12 = sbr.rel (0) target = $region5
    $region4: #{tpu_custom_call.1} parent=1 // pred_region
      _
    $region5: #{tpu_custom_call.1} parent=1 // pred_fallthru
      _
    // Predicated region
    $region6: #{tpu_custom_call.1} parent=1 // pred_check
      _
    $region7: #{tpu_custom_call.1} parent=1 // pred_check_branch
      %14 = sbr.rel (0) target = $region9
    $region8: #{tpu_custom_call.1} parent=1 // pred_region
      _
    $region9: #{tpu_custom_call.1} parent=1 // pred_fallthru
      _
    // Predicated region
    $region10: #{tpu_custom_call.1} parent=1 // pred_check
      _
    $region11: #{tpu_custom_call.1} parent=1 // pred_check_branch
      %16 = sbr.rel (0) target = $region13
    $region12: #{tpu_custom_call.1} parent=1 // pred_region
      _
    $region13: #{tpu_custom_call.1} parent=1 // pred_fallthru
      _
    // Predicated region
    $region14: #{tpu_custom_call.1} parent=1 // pred_check
      _
    $region15: #{tpu_custom_call.1} parent=1 // pred_check_branch
      %18 = sbr.rel (0) target = $region17
    $region16: #{tpu_custom_call.1} parent=1 // pred_region
      _
    $region17: #{tpu_custom_call.1} parent=1 // pred_fallthru
      _
    // Predicated region
    $region18: #{tpu_custom_call.1} parent=1 // pred_check
      _
    $region19: #{tpu_custom_call.1} parent=1 // pred_check_branch
      %20 = sbr.rel (0) target = $region21
    $region20: #{tpu_custom_call.1} parent=1 // pred_region
      _
    $region21: #{tpu_custom_call.1} parent=1 // pred_fallthru
      _
    %v21 = vld [vmem:[%s0] sm:$0xff]
    %v22 = vld [vmem:[%s0 + $0x8] sm:$0xff]
    %v23 = vld [vmem:[%s1] sm:$0xff]
    %v24 = vld [vmem:[%s1 + $0x8] sm:$0xff]
    %v25 = vld [vmem:[%s1 + $0x10] sm:$0xff]
    %v26 = vld [vmem:[%s1 + $0x18] sm:$0xff]
    %v27 = vld [vmem:[%s2] sm:$0x1]
    %v29 = vlaneseq
    %v30 = vshrl.u32 %v29, 7
    %v31 = vsub.s32 0, %v30
    %v32 = vrot.slane %v27, %v31
    %vm34 = vcmask 261120
    %v36 = vsel %vm34, %v21, 0
    %v39 = vsel %vm34, %v22, 0
    %41 = vmatprep.subr.mxu0 0.0
    %42 = vmatpush1.msra.mxu0 %v23
    %43 = vmatprep.subr.mxu0 0.0
    %44 = vmatpush1.msra.mxu0 %v24
    %45 = vmatprep.subr.mxu0 0.0
    %46 = vmatpush1.msra.mxu0 %v25
    %47 = vmatprep.subr.mxu0 0.0
    %48 = vmatpush1.msra.mxu0 %v26
    %49 = vmatprep.subr.mxu0 0.0
    %50 = vmatpush1.msra.mxu0 0.0
    %51 = vmatprep.subr.mxu0 0.0
    %52 = vmatpush1.msra.mxu0 0.0
    %53 = vmatprep.subr.mxu0 0.0
    %54 = vmatpush1.msra.mxu0 0.0
    %55 = vmatprep.subr.mxu0 0.0
    %56 = vmatpush1.msra.mxu0 0.0
    %57 = vmatprep.subr.mxu0 0.0
    %58 = vmatpush1.msra.mxu0 0.0
    %59 = vmatprep.subr.mxu0 0.0
    %60 = vmatpush1.msra.mxu0 0.0
    %61 = vmatprep.subr.mxu0 0.0
    %62 = vmatpush1.msra.mxu0 0.0
    %63 = vmatprep.subr.mxu0 0.0
    %64 = vmatpush1.msra.mxu0 0.0
    %65 = vmatprep.subr.mxu0 0.0
    %66 = vmatpush1.msra.mxu0 0.0
    %67 = vmatprep.subr.mxu0 0.0
    %68 = vmatpush1.msra.mxu0 0.0
    %69 = vmatprep.subr.mxu0 0.0
    %70 = vmatpush1.msra.mxu0 0.0
    %71 = vmatprep.subr.mxu0 0.0
    %72 = vmatpush1.msra.mxu0 0.0
    %73 = vmatprep.subr.mxu0 0.0
    %74 = vmatpush1.msra.mxu0 0.0
    %75 = vmatprep.subr.mxu0 0.0
    %76 = vmatpush1.msra.mxu0 0.0
    %77 = vmatprep.subr.mxu0 0.0
    %78 = vmatpush1.msra.mxu0 0.0
    %79 = vmatprep.subr.mxu0 0.0
    %80 = vmatpush1.msra.mxu0 0.0
    %81 = vmatprep.subr.mxu0 0.0
    %82 = vmatpush1.msra.mxu0 0.0
    %83 = vmatprep.subr.mxu0 0.0
    %84 = vmatpush1.msra.mxu0 0.0
    %85 = vmatprep.subr.mxu0 0.0
    %86 = vmatpush1.msra.mxu0 0.0
    %87 = vmatprep.subr.mxu0 0.0
    %88 = vmatpush1.msra.mxu0 0.0
    %89 = vmatprep.subr.mxu0 0.0
    %90 = vmatpush1.msra.mxu0 0.0
    %91 = vmatprep.subr.mxu0 0.0
    %92 = vmatpush1.msra.mxu0 0.0
    %93 = vmatprep.subr.mxu0 0.0
    %94 = vmatpush1.msra.mxu0 0.0
    %95 = vmatprep.subr.mxu0 0.0
    %96 = vmatpush1.msra.mxu0 0.0
    %97 = vmatprep.subr.mxu0 0.0
    %98 = vmatpush1.msra.mxu0 0.0
    %99 = vmatprep.subr.mxu0 0.0
    %100 = vmatpush1.msra.mxu0 0.0
    %101 = vmatprep.subr.mxu0 0.0
    %102 = vmatpush1.msra.mxu0 0.0
    %103 = vmatprep.subr.mxu0 0.0
    %104 = vmatpush1.msra.mxu0 0.0
    %105 = vmatprep.mubr.f32.mxu0 0.0
    %106 = vmatmul.mubr.f32.gmra.mrb[0].mxu0 %v36
    %v107 = vpop.f32.mrb[0].mxu0
    %v108 = vadd.f32 %v32, %v107
    %v109 = vpop.f32.mrb[0].mxu0
    %110 = vmatprep.mubr.f32.mxu0 0.0
    %111 = vmatmul.mubr.f32.gmra.mrb[0].mxu0 %v39
    %v112 = vpop.f32.mrb[0].mxu0
    %v113 = vadd.f32 %v32, %v112
    %v114 = vpop.f32.mrb[0].mxu0
    %115 = vdwg.mxu0
    %v116 = vmax.f32 %v108, 0.0
    %v117 = vmax.f32 %v113, 0.0
    %v118 = vld [vmem:[%s3] sm:$0xff]
    %v119 = vld [vmem:[%s3 + $0x8] sm:$0xff]
    %v120 = vld [vmem:[%s3 + $0x10] sm:$0xff]
    %v121 = vld [vmem:[%s3 + $0x18] sm:$0xff]
    %v122 = vld [vmem:[%s3 + $0x20] sm:$0xff]
    %v123 = vld [vmem:[%s3 + $0x28] sm:$0xff]
    %v124 = vld [vmem:[%s3 + $0x30] sm:$0xff]
    %v125 = vld [vmem:[%s3 + $0x38] sm:$0xff]
    %v126 = vld [vmem:[%s4] sm:$0x7]
    %v127 = vlaneseq
    %v128 = vshrl.u32 %v127, 7
    %v129 = vsub.s32 0, %v128
    %v130 = vrot.slane %v126, %v129
    %vm131 = vcmask 523264
    %v133 = vsel %vm131, %v116, 0
    %v136 = vsel %vm131, %v117, 0
    %138 = vmatprep.subr.mxu0 0.0
    %139 = vmatpush1.msra.mxu0 %v118
    %140 = vmatprep.subr.mxu0 0.0
    %141 = vmatpush1.msra.mxu0 %v119
    %142 = vmatprep.subr.mxu0 0.0
    %143 = vmatpush1.msra.mxu0 %v120
    %144 = vmatprep.subr.mxu0 0.0
    %145 = vmatpush1.msra.mxu0 %v121
    %146 = vmatprep.subr.mxu0 0.0
    %147 = vmatpush1.msra.mxu0 %v122
    %148 = vmatprep.subr.mxu0 0.0
    %149 = vmatpush1.msra.mxu0 %v123
    %150 = vmatprep.subr.mxu0 0.0
    %151 = vmatpush1.msra.mxu0 %v124
    %152 = vmatprep.subr.mxu0 0.0
    %153 = vmatpush1.msra.mxu0 %v125
    %154 = vmatprep.subr.mxu0 0.0
    %155 = vmatpush1.msra.mxu0 0.0
    %156 = vmatprep.subr.mxu0 0.0
    %157 = vmatpush1.msra.mxu0 0.0
    %158 = vmatprep.subr.mxu0 0.0
    %159 = vmatpush1.msra.mxu0 0.0
    %160 = vmatprep.subr.mxu0 0.0
    %161 = vmatpush1.msra.mxu0 0.0
    %162 = vmatprep.subr.mxu0 0.0
    %163 = vmatpush1.msra.mxu0 0.0
    %164 = vmatprep.subr.mxu0 0.0
    %165 = vmatpush1.msra.mxu0 0.0
    %166 = vmatprep.subr.mxu0 0.0
    %167 = vmatpush1.msra.mxu0 0.0
    %168 = vmatprep.subr.mxu0 0.0
    %169 = vmatpush1.msra.mxu0 0.0
    %170 = vmatprep.subr.mxu0 0.0
    %171 = vmatpush1.msra.mxu0 0.0
    %172 = vmatprep.subr.mxu0 0.0
    %173 = vmatpush1.msra.mxu0 0.0
    %174 = vmatprep.subr.mxu0 0.0
    %175 = vmatpush1.msra.mxu0 0.0
    %176 = vmatprep.subr.mxu0 0.0
    %177 = vmatpush1.msra.mxu0 0.0
    %178 = vmatprep.subr.mxu0 0.0
    %179 = vmatpush1.msra.mxu0 0.0
    %180 = vmatprep.subr.mxu0 0.0
    %181 = vmatpush1.msra.mxu0 0.0
    %182 = vmatprep.subr.mxu0 0.0
    %183 = vmatpush1.msra.mxu0 0.0
    %184 = vmatprep.subr.mxu0 0.0
    %185 = vmatpush1.msra.mxu0 0.0
    %186 = vmatprep.subr.mxu0 0.0
    %187 = vmatpush1.msra.mxu0 0.0
    %188 = vmatprep.subr.mxu0 0.0
    %189 = vmatpush1.msra.mxu0 0.0
    %190 = vmatprep.subr.mxu0 0.0
    %191 = vmatpush1.msra.mxu0 0.0
    %192 = vmatprep.subr.mxu0 0.0
    %193 = vmatpush1.msra.mxu0 0.0
    %194 = vmatprep.subr.mxu0 0.0
    %195 = vmatpush1.msra.mxu0 0.0
    %196 = vmatprep.subr.mxu0 0.0
    %197 = vmatpush1.msra.mxu0 0.0
    %198 = vmatprep.subr.mxu0 0.0
    %199 = vmatpush1.msra.mxu0 0.0
    %200 = vmatprep.subr.mxu0 0.0
    %201 = vmatpush1.msra.mxu0 0.0
    %202 = vmatprep.mubr.f32.mxu0 0.0
    %203 = vmatmul.mubr.f32.gmra.mrb[0].mxu0 %v133
    %v204 = vpop.f32.mrb[0].mxu0
    %v205 = vadd.f32 %v130, %v204
    %v206 = vpop.f32.mrb[0].mxu0
    %207 = vmatprep.mubr.f32.mxu0 0.0
    %208 = vmatmul.mubr.f32.gmra.mrb[0].mxu0 %v136
    %v209 = vpop.f32.mrb[0].mxu0
    %v210 = vadd.f32 %v130, %v209
    %v211 = vpop.f32.mrb[0].mxu0
    %212 = vdwg.mxu0
    %v213 = vadd.f32 %v205, %v21
    %v214 = vadd.f32 %v210, %v22
    %v215 = vsel %vm34, %v213, 0.0
    %216 = vadd.xlane.f32.xlu0 %v215
    %v217 = vpop.xlane.xlu0 %216
    %v218 = vsel %vm34, %v214, 0.0
    %219 = vadd.xlane.f32.xlu0 %v218
    %v220 = vpop.xlane.xlu0 %219
    %v221 = vrcp.pop 32.0
    %v222 = vmul.f32 %v217, %v221
    %v223 = vmul.f32 %v220, %v221
    %v224 = vsub.f32 %v213, %v222
    %v225 = vsub.f32 %v214, %v223
    %v226 = vmul.f32 %v224, %v224
    %v227 = vmul.f32 %v225, %v225
    %v228 = vsel %vm34, %v226, 0.0
    %229 = vadd.xlane.f32.xlu0 %v228
    %v230 = vpop.xlane.xlu0 %229
    %v231 = vsel %vm34, %v227, 0.0
    %232 = vadd.xlane.f32.xlu0 %v231
    %v233 = vpop.xlane.xlu0 %232
    %v234 = vmul.f32 %v230, %v221
    %v235 = vmul.f32 %v233, %v221
    %v236 = vadd.f32 %v234, 1e-06
    %v237 = vadd.f32 %v235, 1e-06
    %v238 = vrsqrt.pop %v236
    %v239 = vrsqrt.pop %v237
    %v240 = vmul.f32 %v224, %v238
    %v241 = vmul.f32 %v225, %v239
    %v242 = vlaneseq
    %v243 = vshrl.u32 %v242, 7
    %v244 = vsub.s32 1, %v243
    %v245 = vrot.slane %v126, %v244
    %v246 = vmul.f32 %v240, %v245
    %v247 = vmul.f32 %v241, %v245
    %v248 = vlaneseq
    %v249 = vshrl.u32 %v248, 7
    %v250 = vsub.s32 2, %v249
    %v251 = vrot.slane %v126, %v250
    %v252 = vadd.f32 %v246, %v251
    %v253 = vadd.f32 %v247, %v251
    %254 = vst.msk [vmem:[#allocation2] sm:$0xff] %vm34, %v252
    %255 = vst.msk [vmem:[#allocation2 + $0x8] sm:$0xff] %vm34, %v253
    // Predicated region
    $region22: #{tpu_custom_call.1} parent=1 // pred_check
      _
    $region23: #{tpu_custom_call.1} parent=1 // pred_check_branch
      %257 = sbr.rel (0) target = $region25
    $region24: #{tpu_custom_call.1} parent=1 // pred_region
      %s259 = ssub.s32 256, 256
      %260 = vsyncadd [#allocation3], %s259
      %s261 = sshll.u32 [#allocation2], 4
      %s262 = int_to_ptr.vmem [resolvable:$true] %s261
      %267 = dma.vmem_to_hbm [thread:$0]  %s262, 256, %s5, [#allocation3], 128, 128, 8
    $region25: #{tpu_custom_call.1} parent=1 // pred_fallthru
      _
    // Predicated region
    $region26: #{tpu_custom_call.1} parent=1 // pred_check
      _
    $region27: #{tpu_custom_call.1} parent=1 // pred_check_branch
      %269 = sbr.rel (0) target = $region29
    $region28: #{tpu_custom_call.1} parent=1 // pred_region
      %270 = dma.done [#allocation3], 256
    $region29: #{tpu_custom_call.1} parent=1 // pred_fallthru
      _
    %271 = vsyncpa [#allocation3], 1

</llo_original>
